<compile_context>
chip_gen: v6e
topology: v6e:2x2x1
jax: 0.10.0
libtpu: 0.0.40
codegen_flags: <defaults>
</compile_context>

<pallas_src>
from functools import partial

import numpy as np
import jax
import jax.numpy as jnp
from jax import lax
from jax.experimental import pallas as pl
from jax.experimental.pallas import tpu as pltpu

FOCAL_ALPHA = 0.25
FOCAL_GAMMA = 2.0            # gamma = 2 is baked in as the squared (1 - p_t) factor
COST_CLASS_W = 2.0
COST_BBOX_W = 5.0
COST_GIOU_W = 2.0
_EPS = 1e-9
_VMEM_LIMIT = 32 * 1024 * 1024   # explicit scoped-VMEM limit (v5e headroom)


def _round_up(x, m):
    return ((x + m - 1) // m) * m


# ------------------------------------------------------------------ kernels --

def _make_cost_card_kernel(num_queries, alpha):
    """Fused matcher-cost + cardinality kernel (one grid step per decoder level).

    logits : [B, C, Qpad] f32   (queries on lanes)
    pboxes : [B, 2, Qpad] f32   (center, width)
    tlab   : [B, Tpad]    i32   (padded with an out-of-range class id)
    tbox   : [B, Tpad, 2] f32   (padded with 0.5 -> finite GIoU)
    cost   : [B, Tpad, Qpad] f32 out (focal class cost + L1 - GIoU)
    card   : [B, 1] f32 out      (# queries whose argmax != last class)
    """

    def kernel(logits_ref, pboxes_ref, tlab_ref, tbox_ref, cost_ref, card_ref):
        x = logits_ref[...]                               # [B, C, Qp]
        pb = pboxes_ref[...]                              # [B, 2, Qp]
        tl = tlab_ref[...]                                # [B, Tp]
        tb = tbox_ref[...]                                # [B, Tp, 2]
        B, C, Qp = x.shape
        Tp = tl.shape[1]

        # cardinality: non-empty iff max over real classes >= no-object logit
        qvalid = lax.broadcasted_iota(jnp.int32, (B, 1, Qp), 2) < num_queries
        top = jnp.max(x[:, :C - 1, :], axis=1, keepdims=True)      # [B, 1, Qp]
        last = x[:, C - 1:C, :]                                     # [B, 1, Qp]
        non_empty = jnp.where(jnp.logical_and(top >= last, qvalid), 1.0, 0.0)
        card_ref[...] = jnp.sum(non_empty, axis=2)                  # [B, 1]

        # ---- class cost: gather RAW logits first (one-hot MXU matmul), then
        # apply the pointwise focal-cost formula on the gathered tensor ----
        onehot = (lax.broadcasted_iota(jnp.int32, (B, Tp, C), 2)
                  == tl[:, :, None]).astype(jnp.float32)            # [B, Tp, C]
        g = jnp.einsum('btc,bcq->btq', onehot, x,
                       preferred_element_type=jnp.float32)          # [B, Tp, Qp]
        e = jnp.exp(-jnp.abs(g))
        log1pe = jnp.log(1.0 + e)
        r = 1.0 / (1.0 + e)                                         # exact
        prob = jnp.where(g >= 0.0, r, e * r)
        one_m = 1.0 - prob
        # -log(1 - p) = max(g, 0) + log1pe ;  -log(p) = log1pe - min(g, 0)
        neg_cost = (1.0 - alpha) * prob * prob * (jnp.maximum(g, 0.0) + log1pe)
        pos_cost = alpha * one_m * one_m * (log1pe - jnp.minimum(g, 0.0))
        cost_class = pos_cost - neg_cost                            # [B, Tp, Qp]

        # ---- batched box L1 + 1-D GIoU, broadcast over [B, Tp, Qp] ----
        pc = pb[:, 0:1, :]
        pw = pb[:, 1:2, :]                                          # [B, 1, Qp]
        tc = tb[:, :, 0:1]
        tw = tb[:, :, 1:2]                                          # [B, Tp, 1]
        cost_bbox = jnp.abs(pc - tc) + jnp.abs(pw - tw)             # [B, Tp, Qp]
        px0 = pc - 0.5 * pw
        px1 = pc + 0.5 * pw
        tx0 = tc - 0.5 * tw
        tx1 = tc + 0.5 * tw
        inter = jnp.maximum(jnp.minimum(px1, tx1) - jnp.maximum(px0, tx0), 0.0)
        union = jnp.maximum((px1 - px0) + (tx1 - tx0) - inter, _EPS)
        iou = inter / union
        enclose = jnp.maximum(jnp.maximum(px1, tx1) - jnp.minimum(px0, tx0), _EPS)
        giou = iou - (enclose - union) / enclose

        # single lane-dense full-tile store
        cost_ref[...] = (COST_BBOX_W * cost_bbox + COST_CLASS_W * cost_class
                         - COST_GIOU_W * giou)

    return kernel


def _make_loss_kernel(num_queries, alpha):
    """Fused per-level loss kernel: focal-loss sum, matched box L1 / GIoU sums,
    and matched-classification accuracy count — packed into one (1, 4) tile.

    logits : [B, C, Qpad] f32
    pboxes : [B, 2, Qpad] f32
    tcls   : [B, Qpad]    i32  (matched class id, else >= C -> zero one-hot row)
    tbox   : [B, 2, Qpad] f32  (matched target box, else 0.5)
    out    : [1, 4] f32  (focal_sum, l1_sum, giou_sum, acc_count)
    """

    def kernel(logits_ref, pboxes_ref, tcls_ref, tbox_ref, out_ref):
        x = logits_ref[...]                               # [B, C, Qp]
        B, C, Qp = x.shape
        tcls = tcls_ref[...]                              # [B, Qp]
        matched = tcls < C                                # bool [B, Qp] (in-kernel bmask)
        qvalid = (lax.broadcasted_iota(jnp.int32, (B, 1, Qp), 2)
                  < num_queries)                          # bool [B, 1, Qp]

        def _sum11(t):                                    # full-sum to (1, 1)
            while t.ndim > 2:
                t = jnp.sum(t, axis=0)
            return jnp.sum(t, keepdims=True)

        # ---- sigmoid focal loss (where-blends on the boolean one-hot) ----
        cls_iota = lax.broadcasted_iota(jnp.int32, (B, C, Qp), 1)
        onehot_b = cls_iota == tcls[:, None, :]           # bool [B, C, Qp]
        e = jnp.exp(-jnp.abs(x))
        log1pe = jnp.log(1.0 + e)
        r = 1.0 / (1.0 + e)
        prob = jnp.where(x >= 0.0, r, e * r)
        base = jnp.maximum(x, 0.0) + log1pe               # stable -log(1 - sigmoid(x))
        ce = jnp.where(onehot_b, base - x, base)          # stable BCE-with-logits
        p_t = jnp.where(onehot_b, prob, 1.0 - prob)
        alpha_t = jnp.where(onehot_b, alpha, 1.0 - alpha)
        one_m = 1.0 - p_t
        focal = alpha_t * ce * one_m * one_m              # gamma = 2
        focal = jnp.where(qvalid, focal, 0.0)             # mask once, at the end
        focal_s = _sum11(focal)                           # (1, 1)

        # ---- classification accuracy on matched queries (first-max argmax) ----
        mx = jnp.max(x, axis=1, keepdims=True)
        am = jnp.min(jnp.where(x == mx, cls_iota, C), axis=1)        # [B, Qp]
        correct = jnp.where(jnp.logical_and(am == tcls, matched), 1.0, 0.0)
        acc_s = _sum11(correct)                                       # (1, 1)

        # ---- matched box L1 / GIoU sums ----
        pbx = pboxes_ref[...]                             # [B, 2, Qp]
        tbx = tbox_ref[...]                               # [B, 2, Qp]
        bm3 = jnp.where(matched, 1.0, 0.0)[:, None, :]    # [B, 1, Qp]
        l1_s = _sum11(jnp.abs(pbx - tbx) * bm3)
        pc = pbx[:, 0:1, :]
        pw = pbx[:, 1:2, :]
        tc = tbx[:, 0:1, :]
        tw = tbx[:, 1:2, :]
        px0 = pc - 0.5 * pw
        px1 = pc + 0.5 * pw
        tx0 = tc - 0.5 * tw
        tx1 = tc + 0.5 * tw
        inter = jnp.maximum(jnp.minimum(px1, tx1) - jnp.maximum(px0, tx0), 0.0)
        union = jnp.maximum((px1 - px0) + (tx1 - tx0) - inter, _EPS)
        iou = inter / union
        enclose = jnp.maximum(jnp.maximum(px1, tx1) - jnp.minimum(px0, tx0), _EPS)
        giou = iou - (enclose - union) / enclose
        giou_s = _sum11((1.0 - giou) * bm3)

        # ---- pack the four scalars into one (1, 4) tile, single store ----
        lane = lax.broadcasted_iota(jnp.int32, (1, 4), 1)
        out_ref[...] = jnp.where(lane == 0, focal_s,
                       jnp.where(lane == 1, l1_s,
                       jnp.where(lane == 2, giou_s, acc_s)))

    return kernel


# ----------------------------------------------------------------- wrappers --

def compute_cost_and_cardinality(logits_t, pboxes_t, tlab, tbox, num_queries,
                                 alpha=FOCAL_ALPHA):
    """logits_t [L,B,C,Qpad], pboxes_t [L,B,2,Qpad], tlab [B,Tpad] i32,
    tbox [B,Tpad,2] f32 -> (cost [L,B,Tpad,Qpad], card [L,B,1])."""
    L, B, C, Qp = logits_t.shape
    Tp = tlab.shape[1]
    kernel = _make_cost_card_kernel(num_queries, alpha)
    return pl.pallas_call(
        kernel,
        grid=(L,),
        out_shape=(jax.ShapeDtypeStruct((L, B, Tp, Qp), jnp.float32),
                   jax.ShapeDtypeStruct((L, B, 1), jnp.float32)),
        in_specs=[
            pl.BlockSpec((None, B, C, Qp), lambda l: (l, 0, 0, 0)),
            pl.BlockSpec((None, B, 2, Qp), lambda l: (l, 0, 0, 0)),
            pl.BlockSpec((B, Tp), lambda l: (0, 0)),
            pl.BlockSpec((B, Tp, 2), lambda l: (0, 0, 0)),
        ],
        out_specs=(
            pl.BlockSpec((None, B, Tp, Qp), lambda l: (l, 0, 0, 0)),
            pl.BlockSpec((None, B, 1), lambda l: (l, 0, 0)),
        ),
        compiler_params=pltpu.CompilerParams(
            dimension_semantics=("parallel",),
            vmem_limit_bytes=_VMEM_LIMIT),
    )(logits_t, pboxes_t, tlab, tbox)


def compute_level_losses(logits_t, pboxes_t, tcls, tbox_d, num_queries,
                         alpha=FOCAL_ALPHA):
    """Per-level fused loss reductions -> packed [L, 1, 4] f32
    (focal_sum, l1_sum, giou_sum, acc_count)."""
    L, B, C, Qp = logits_t.shape
    kernel = _make_loss_kernel(num_queries, alpha)
    return pl.pallas_call(
        kernel,
        grid=(L,),
        out_shape=jax.ShapeDtypeStruct((L, 1, 4), jnp.float32),
        in_specs=[
            pl.BlockSpec((None, B, C, Qp), lambda l: (l, 0, 0, 0)),
            pl.BlockSpec((None, B, 2, Qp), lambda l: (l, 0, 0, 0)),
            pl.BlockSpec((None, B, Qp), lambda l: (l, 0, 0)),
            pl.BlockSpec((None, B, 2, Qp), lambda l: (l, 0, 0, 0)),
        ],
        out_specs=pl.BlockSpec((None, 1, 4), lambda l: (l, 0, 0)),
        compiler_params=pltpu.CompilerParams(
            dimension_semantics=("parallel",),
            vmem_limit_bytes=_VMEM_LIMIT),
    )(logits_t, pboxes_t, tcls, tbox_d)


# ---------------------------------------------------------- jitted sections --

@partial(jax.jit, static_argnames=("num_queries", "qpad", "alpha"))
def _device_stage1(logits, pboxes, tlab, tbox, *, num_queries, qpad, alpha):
    """Layout (transpose/pad to lane-dense queries) + cost/cardinality call."""
    L, B, Q, C = logits.shape
    logits_t = jnp.pad(jnp.transpose(logits, (0, 1, 3, 2)),
                       ((0, 0), (0, 0), (0, 0), (0, qpad - Q)))
    pboxes_t = jnp.pad(jnp.transpose(pboxes, (0, 1, 3, 2)),
                       ((0, 0), (0, 0), (0, 0), (0, qpad - Q)),
                       constant_values=0.5)
    cost, card = compute_cost_and_cardinality(logits_t, pboxes_t, tlab, tbox,
                                              num_queries, alpha)
    return logits_t, pboxes_t, cost, card


@partial(jax.jit, static_argnames=("num_queries", "alpha"))
def _device_stage2(logits_t, pboxes_t, tcls, tbox_d, card, tgt_lengths,
                   num_boxes, total_tgts, *, num_queries, alpha):
    """Loss-reduction call + per-level scalar arithmetic, fused under one jit."""
    packed = compute_level_losses(logits_t, pboxes_t, tcls, tbox_d,
                                  num_queries, alpha)           # [L, 1, 4]
    focal = packed[:, 0, 0]
    l1 = packed[:, 0, 1]
    gi = packed[:, 0, 2]
    acc = packed[:, 0, 3]
    # (focal_sum / (Q * num_boxes)) * Q  ==  focal_sum / num_boxes
    loss_ce = focal / num_boxes
    loss_bbox = l1 / num_boxes
    loss_giou = gi / num_boxes
    card_err = jnp.mean(jnp.abs(card[:, :, 0] - tgt_lengths[None, :]), axis=1)
    acc_pct = jnp.where(total_tgts > 0.0,
                        100.0 * acc[0] / jnp.maximum(total_tgts, 1.0), 0.0)
    class_error = 100.0 - acc_pct
    return loss_ce, loss_bbox, loss_giou, card_err, class_error


# ------------------------------------------------------------------ matcher --

class HungarianOrGreedyMatcher:
    """Assignment on a host-side cost matrix of shape [num_targets, num_queries].

    The cost matrix itself comes from the Pallas kernel; the combinatorial
    assignment runs on host (exact Hungarian via scipy when available).
    """

    def __init__(self):
        try:
            from scipy.optimize import linear_sum_assignment
            self._lsa = linear_sum_assignment
        except Exception:
            # TODO(synk): greedy fallback is not exact Hungarian matching.
            self._lsa = None

    def assign(self, cost_tq):
        n, _ = cost_tq.shape
        if n == 0:
            return np.zeros(0, np.int64), np.zeros(0, np.int64)
        if self._lsa is not None:
            q_idx, t_idx = self._lsa(np.ascontiguousarray(cost_tq.T))
            return q_idx.astype(np.int64), t_idx.astype(np.int64)
        cost = cost_tq.astype(np.float64).copy()
        src, tgt = [], []
        for _ in range(n):
            t, q = np.unravel_index(int(np.argmin(cost)), cost.shape)
            src.append(int(q))
            tgt.append(int(t))
            cost[t, :] = np.inf
            cost[:, q] = np.inf
        return np.asarray(src, np.int64), np.asarray(tgt, np.int64)


# -------------------------------------------------------------- SetCriterion --

class SetCriterion:
    """Deformable-DETR SetCriterion forward ('labels', 'cardinality', 'boxes').

    All dense math for main + aux levels runs in two fused (and jitted) Pallas
    sections; the only device->host sync is the (trimmed) cost-matrix download
    for the assignment step.
    """

    def __init__(self, num_classes, matcher, weight_dict, losses, focal_alpha=0.25):
        self.num_classes = num_classes + 1
        self.matcher = matcher
        self.weight_dict = weight_dict
        self.losses = losses
        self.focal_alpha = focal_alpha

    def forward(self, outputs, targets):
        main = {k: v for k, v in outputs.items()
                if k not in ('aux_outputs', 'enc_outputs')}
        levels = [main] + list(outputs.get('aux_outputs', []))
        L = len(levels)

        logits = jnp.stack([lv['pred_logits'] for lv in levels])   # [L, B, Q, C]
        pboxes = jnp.stack([lv['pred_boxes'] for lv in levels])    # [L, B, Q, 2]
        _, B, Q, C = logits.shape
        Qpad = _round_up(max(Q, 128), 128)

        sizes = [int(np.asarray(t['labels']).shape[0]) for t in targets]
        num_boxes = float(max(sum(sizes), 1))    # world_size = 1, no all_reduce
        Tmax = max(max(sizes), 1)
        Tpad = _round_up(Tmax, 8)
        tl_pad = np.full((B, Tpad), C, np.int32)          # out-of-range -> zero one-hot
        tb_pad = np.full((B, Tpad, 2), 0.5, np.float32)   # safe pad (finite GIoU)
        for b, t in enumerate(targets):
            n = sizes[b]
            if n:
                tl_pad[b, :n] = np.asarray(t['labels'], np.int32)
                tb_pad[b, :n] = np.asarray(t['boxes'], np.float32)

        # ---- jitted section #1: layout + cost matrices + cardinality ----
        logits_t, pboxes_t, cost, card = _device_stage1(
            logits, pboxes, jnp.asarray(tl_pad), jnp.asarray(tb_pad),
            num_queries=Q, qpad=Qpad, alpha=self.focal_alpha)

        # ---- single device->host sync: trimmed cost download + assignment ----
        cost_np = np.asarray(cost[:, :, :Tmax, :Q])        # [L, B, Tmax, Q]
        indices = [[self.matcher.assign(cost_np[l, b, :sizes[b], :])
                    for b in range(B)] for l in range(L)]

        # dense matched-target layouts for the fused loss kernel (host-built,
        # no device->host copy of pred_boxes / pred_logits needed)
        tcls = np.full((L, B, Qpad), self.num_classes, np.int32)
        tbox_d = np.full((L, B, 2, Qpad), 0.5, np.float32)
        for l in range(L):
            for b in range(B):
                src_idx, tgt_idx = indices[l][b]
                if src_idx.size == 0:
                    continue
                lab = np.asarray(targets[b]['labels'], np.int64)
                box = np.asarray(targets[b]['boxes'], np.float32)
                tcls[l, b, src_idx] = lab[tgt_idx]
                tbox_d[l, b, 0, src_idx] = box[tgt_idx, 0]
                tbox_d[l, b, 1, src_idx] = box[tgt_idx, 1]

        tgt_lengths = jnp.asarray(sizes, jnp.float32)
        total_tgts = float(sum(sizes))

        # ---- jitted section #2: loss reductions + per-level scalar math ----
        loss_ce, loss_bbox, loss_giou, card_err, class_error = _device_stage2(
            logits_t, pboxes_t, jnp.asarray(tcls), jnp.asarray(tbox_d),
            card, tgt_lengths, jnp.float32(num_boxes), jnp.float32(total_tgts),
            num_queries=Q, alpha=self.focal_alpha)

        losses = {}
        for li in range(L):
            sfx = '' if li == 0 else f'_{li - 1}'
            if 'labels' in self.losses:
                losses['loss_ce' + sfx] = loss_ce[li]
                if li == 0:
                    losses['class_error'] = class_error
            if 'cardinality' in self.losses:
                losses['cardinality_error' + sfx] = card_err[li]
            if 'boxes' in self.losses:
                losses['loss_bbox' + sfx] = loss_bbox[li]
                losses['loss_giou' + sfx] = loss_giou[li]
        return losses


# --------------------------------------------------------------------- main --

if __name__ == "__main__":
    key = jax.random.PRNGKey(0)
    k1, k2, k3, k4, k5, k6, k7, k8 = jax.random.split(key, 8)

    B, Q, num_classes = 2, 16, 6
    C = num_classes + 1   # logits channels; channel C-1 acts as 'no-object'

    pred_logits = jax.random.normal(k1, (B, Q, C), jnp.float32)
    pred_boxes = jax.nn.sigmoid(jax.random.normal(k2, (B, Q, 2), jnp.float32))
    aux_logits = jax.random.normal(k5, (B, Q, C), jnp.float32)
    aux_boxes = jax.nn.sigmoid(jax.random.normal(k6, (B, Q, 2), jnp.float32))

    targets = [
        {'labels': np.asarray(jax.random.randint(k3, (3,), 0, num_classes)),
         'boxes': np.asarray(jax.random.uniform(k4, (3, 2), minval=0.1, maxval=0.6),
                             np.float32)},
        {'labels': np.asarray(jax.random.randint(k7, (2,), 0, num_classes)),
         'boxes': np.asarray(jax.random.uniform(k8, (2, 2), minval=0.1, maxval=0.6),
                             np.float32)},
    ]

    outputs = {
        'pred_logits': pred_logits,
        'pred_boxes': pred_boxes,
        'aux_outputs': [{'pred_logits': aux_logits, 'pred_boxes': aux_boxes}],
    }

    criterion = SetCriterion(
        num_classes=num_classes,
        matcher=HungarianOrGreedyMatcher(),
        weight_dict={'loss_ce': 2.0, 'loss_bbox': 5.0, 'loss_giou': 2.0},
        losses=['labels', 'boxes', 'cardinality'],
        focal_alpha=0.25,
    )

    losses = criterion.forward(outputs, targets)
    losses = {k: jax.block_until_ready(jnp.asarray(v, jnp.float32))
              for k, v in losses.items()}
    assert all(np.isfinite(float(v)) for v in losses.values())
    print("KERNEL_OK")
</pallas_src>

<mosaic_0001>
module attributes {stable_mosaic.version = 11 : i64} {
  func.func @kernel(%arg0: i32, %arg1: memref<1x2x7x128xf32, #tpu.memory_space<vmem>>, %arg2: memref<1x2x2x128xf32, #tpu.memory_space<vmem>>, %arg3: memref<2x8xi32, #tpu.memory_space<vmem>>, %arg4: memref<2x8x2xf32, #tpu.memory_space<vmem>>, %arg5: memref<1x2x8x128xf32, #tpu.memory_space<vmem>>, %arg6: memref<1x2x1xf32, #tpu.memory_space<vmem>>) attributes {dimension_semantics = [#tpu.dimension_semantics<parallel>], iteration_bounds = array<i64: 2>, scalar_prefetch = 0 : i64, scratch_operands = 0 : i64, tpu.core_type = #tpu.core_type<tc>, window_params = [{transform_indices = @transform_0, window_bounds = array<i64: 1, 2, 7, 128>}, {transform_indices = @transform_1, window_bounds = array<i64: 1, 2, 2, 128>}, {pipeline_mode = #tpu.pipeline_mode<synchronous>, transform_indices = @transform_2, window_bounds = array<i64: 2, 8>}, {pipeline_mode = #tpu.pipeline_mode<synchronous>, transform_indices = @transform_3, window_bounds = array<i64: 2, 8, 2>}, {transform_indices = @transform_4, window_bounds = array<i64: 1, 2, 8, 128>}, {transform_indices = @transform_5, window_bounds = array<i64: 1, 2, 1>}]} {
    %c0 = arith.constant 0 : index
    %c0_0 = arith.constant 0 : index
    %c0_1 = arith.constant 0 : index
    %c0_2 = arith.constant 0 : index
    %0 = vector.load %arg1[%c0, %c0_0, %c0_1, %c0_2] : memref<1x2x7x128xf32, #tpu.memory_space<vmem>>, vector<1x2x7x128xf32>
    %1 = vector.shape_cast %0 : vector<1x2x7x128xf32> to vector<2x7x128xf32>
    %c0_3 = arith.constant 0 : index
    %c0_4 = arith.constant 0 : index
    %c0_5 = arith.constant 0 : index
    %c0_6 = arith.constant 0 : index
    %2 = vector.load %arg2[%c0_3, %c0_4, %c0_5, %c0_6] : memref<1x2x2x128xf32, #tpu.memory_space<vmem>>, vector<1x2x2x128xf32>
    %3 = vector.shape_cast %2 : vector<1x2x2x128xf32> to vector<2x2x128xf32>
    %c0_7 = arith.constant 0 : index
    %c0_8 = arith.constant 0 : index
    %4 = vector.load %arg3[%c0_7, %c0_8] : memref<2x8xi32, #tpu.memory_space<vmem>>, vector<2x8xi32>
    %c0_9 = arith.constant 0 : index
    %c0_10 = arith.constant 0 : index
    %c0_11 = arith.constant 0 : index
    %5 = vector.load %arg4[%c0_9, %c0_10, %c0_11] : memref<2x8x2xf32, #tpu.memory_space<vmem>>, vector<2x8x2xf32>
    %6 = tpu.iota {dimensions = array<i32: 2>} : vector<2x1x128xi32>
    %c16_i32 = arith.constant 16 : i32
    %7 = vector.broadcast %c16_i32 : i32 to vector<2x1x128xi32>
    %8 = arith.cmpi slt, %6, %7 : vector<2x1x128xi32>
    %9 = vector.extract_strided_slice %1 {offsets = [0, 0, 0], sizes = [2, 6, 128], strides = [1, 1, 1]} : vector<2x7x128xf32> to vector<2x6x128xf32>
    %cst = arith.constant dense<0xFF800000> : vector<2x128xf32>
    %10 = vector.multi_reduction <maximumf>, %9, %cst [1] : vector<2x6x128xf32> to vector<2x128xf32>
    %11 = vector.shape_cast %10 : vector<2x128xf32> to vector<2x1x128xf32>
    %12 = vector.extract_strided_slice %1 {offsets = [0, 6, 0], sizes = [2, 1, 128], strides = [1, 1, 1]} : vector<2x7x128xf32> to vector<2x1x128xf32>
    %13 = arith.cmpf oge, %11, %12 : vector<2x1x128xf32>
    %14 = arith.andi %13, %8 : vector<2x1x128xi1>
    %cst_12 = arith.constant 1.000000e+00 : f32
    %cst_13 = arith.constant 0.000000e+00 : f32
    %15 = vector.broadcast %cst_12 : f32 to vector<2x1x128xf32>
    %16 = vector.broadcast %cst_13 : f32 to vector<2x1x128xf32>
    %17 = arith.select %14, %15, %16 : vector<2x1x128xi1>, vector<2x1x128xf32>
    %cst_14 = arith.constant dense<0.000000e+00> : vector<2x1xf32>
    %18 = vector.multi_reduction <add>, %17, %cst_14 [2] : vector<2x1x128xf32> to vector<2x1xf32>
    %c0_15 = arith.constant 0 : index
    %c0_16 = arith.constant 0 : index
    %c0_17 = arith.constant 0 : index
    %19 = vector.load %arg6[%c0_15, %c0_16, %c0_17] : memref<1x2x1xf32, #tpu.memory_space<vmem>>, vector<1x2x1xf32>
    %20 = vector.shape_cast %19 : vector<1x2x1xf32> to vector<2x1xf32>
    %21 = vector.shape_cast %18 : vector<2x1xf32> to vector<1x2x1xf32>
    tpu.vector_store %arg6[%c0_15, %c0_16, %c0_17], %21 {strides = array<i32>} : memref<1x2x1xf32, #tpu.memory_space<vmem>>, vector<1x2x1xf32>,
    %22 = tpu.iota {dimensions = array<i32: 2>} : vector<2x8x7xi32>
    %23 = vector.shape_cast %4 : vector<2x8xi32> to vector<2x8x1xi32>
    %24 = vector.broadcast %23 : vector<2x8x1xi32> to vector<2x8x7xi32>
    %25 = arith.cmpi eq, %22, %24 : vector<2x8x7xi32>
    %26 = arith.extui %25 : vector<2x8x7xi1> to vector<2x8x7xi32>
    %27 = arith.sitofp %26 : vector<2x8x7xi32> to vector<2x8x7xf32>
    "tpu.trace_start"() <{level = 10 : i32, message = "btc,bcq->btq"}> : () -> ()
    %cst_18 = arith.constant dense<0.000000e+00> : vector<2x8x128xf32>
    %28 = tpu.matmul %27, %1, %cst_18 {dimension_numbers = #tpu.dot_dimension_numbers<[2], [1], [1], [2], [0, 0, 0, 1, 1, 2], [0], [0]>} : vector<2x8x7xf32>, vector<2x7x128xf32>, vector<2x8x128xf32> -> vector<2x8x128xf32>
    "tpu.trace_stop"() : () -> ()
    %29 = math.absf %28 : vector<2x8x128xf32>
    %cst_19 = arith.constant 0.000000e+00 : f32
    %30 = vector.broadcast %cst_19 : f32 to vector<2x8x128xf32>
    %31 = arith.subf %30, %29 : vector<2x8x128xf32>
    %32 = math.exp %31 : vector<2x8x128xf32>
    %cst_20 = arith.constant 1.000000e+00 : f32
    %33 = vector.broadcast %cst_20 : f32 to vector<2x8x128xf32>
    %34 = arith.addf %33, %32 : vector<2x8x128xf32>
    %35 = math.log %34 : vector<2x8x128xf32>
    %cst_21 = arith.constant 1.000000e+00 : f32
    %36 = vector.broadcast %cst_21 : f32 to vector<2x8x128xf32>
    %37 = arith.addf %36, %32 : vector<2x8x128xf32>
    %cst_22 = arith.constant 1.000000e+00 : f32
    %38 = vector.broadcast %cst_22 : f32 to vector<2x8x128xf32>
    %39 = arith.divf %38, %37 : vector<2x8x128xf32>
    %cst_23 = arith.constant 0.000000e+00 : f32
    %40 = vector.broadcast %cst_23 : f32 to vector<2x8x128xf32>
    %41 = arith.cmpf oge, %28, %40 : vector<2x8x128xf32>
    %42 = arith.mulf %32, %39 : vector<2x8x128xf32>
    %43 = arith.select %41, %39, %42 : vector<2x8x128xi1>, vector<2x8x128xf32>
    %cst_24 = arith.constant 1.000000e+00 : f32
    %44 = vector.broadcast %cst_24 : f32 to vector<2x8x128xf32>
    %45 = arith.subf %44, %43 : vector<2x8x128xf32>
    %cst_25 = arith.constant 7.500000e-01 : f32
    %46 = vector.broadcast %cst_25 : f32 to vector<2x8x128xf32>
    %47 = arith.mulf %46, %43 : vector<2x8x128xf32>
    %48 = arith.mulf %47, %43 : vector<2x8x128xf32>
    %cst_26 = arith.constant 0.000000e+00 : f32
    %49 = vector.broadcast %cst_26 : f32 to vector<2x8x128xf32>
    %50 = arith.maximumf %28, %49 : vector<2x8x128xf32>
    %51 = arith.addf %50, %35 : vector<2x8x128xf32>
    %52 = arith.mulf %48, %51 : vector<2x8x128xf32>
    %cst_27 = arith.constant 2.500000e-01 : f32
    %53 = vector.broadcast %cst_27 : f32 to vector<2x8x128xf32>
    %54 = arith.mulf %53, %45 : vector<2x8x128xf32>
    %55 = arith.mulf %54, %45 : vector<2x8x128xf32>
    %cst_28 = arith.constant 0.000000e+00 : f32
    %56 = vector.broadcast %cst_28 : f32 to vector<2x8x128xf32>
    %57 = arith.minimumf %28, %56 : vector<2x8x128xf32>
    %58 = arith.subf %35, %57 : vector<2x8x128xf32>
    %59 = arith.mulf %55, %58 : vector<2x8x128xf32>
    %60 = arith.subf %59, %52 : vector<2x8x128xf32>
    %61 = vector.extract_strided_slice %3 {offsets = [0, 0, 0], sizes = [2, 1, 128], strides = [1, 1, 1]} : vector<2x2x128xf32> to vector<2x1x128xf32>
    %62 = vector.extract_strided_slice %3 {offsets = [0, 1, 0], sizes = [2, 1, 128], strides = [1, 1, 1]} : vector<2x2x128xf32> to vector<2x1x128xf32>
    %63 = vector.extract_strided_slice %5 {offsets = [0, 0, 0], sizes = [2, 8, 1], strides = [1, 1, 1]} : vector<2x8x2xf32> to vector<2x8x1xf32>
    %64 = vector.extract_strided_slice %5 {offsets = [0, 0, 1], sizes = [2, 8, 1], strides = [1, 1, 1]} : vector<2x8x2xf32> to vector<2x8x1xf32>
    %65 = vector.broadcast %61 : vector<2x1x128xf32> to vector<2x8x128xf32>
    %66 = vector.broadcast %63 : vector<2x8x1xf32> to vector<2x8x128xf32>
    %67 = arith.subf %65, %66 : vector<2x8x128xf32>
    %68 = math.absf %67 : vector<2x8x128xf32>
    %69 = vector.broadcast %62 : vector<2x1x128xf32> to vector<2x8x128xf32>
    %70 = vector.broadcast %64 : vector<2x8x1xf32> to vector<2x8x128xf32>
    %71 = arith.subf %69, %70 : vector<2x8x128xf32>
    %72 = math.absf %71 : vector<2x8x128xf32>
    %73 = arith.addf %68, %72 : vector<2x8x128xf32>
    %cst_29 = arith.constant 5.000000e-01 : f32
    %74 = vector.broadcast %cst_29 : f32 to vector<2x1x128xf32>
    %75 = arith.mulf %74, %62 : vector<2x1x128xf32>
    %76 = arith.subf %61, %75 : vector<2x1x128xf32>
    %cst_30 = arith.constant 5.000000e-01 : f32
    %77 = vector.broadcast %cst_30 : f32 to vector<2x1x128xf32>
    %78 = arith.mulf %77, %62 : vector<2x1x128xf32>
    %79 = arith.addf %61, %78 : vector<2x1x128xf32>
    %cst_31 = arith.constant 5.000000e-01 : f32
    %80 = vector.broadcast %cst_31 : f32 to vector<2x8x1xf32>
    %81 = arith.mulf %80, %64 : vector<2x8x1xf32>
    %82 = arith.subf %63, %81 : vector<2x8x1xf32>
    %cst_32 = arith.constant 5.000000e-01 : f32
    %83 = vector.broadcast %cst_32 : f32 to vector<2x8x1xf32>
    %84 = arith.mulf %83, %64 : vector<2x8x1xf32>
    %85 = arith.addf %63, %84 : vector<2x8x1xf32>
    %86 = vector.broadcast %79 : vector<2x1x128xf32> to vector<2x8x128xf32>
    %87 = vector.broadcast %85 : vector<2x8x1xf32> to vector<2x8x128xf32>
    %88 = arith.minimumf %86, %87 : vector<2x8x128xf32>
    %89 = vector.broadcast %76 : vector<2x1x128xf32> to vector<2x8x128xf32>
    %90 = vector.broadcast %82 : vector<2x8x1xf32> to vector<2x8x128xf32>
    %91 = arith.maximumf %89, %90 : vector<2x8x128xf32>
    %92 = arith.subf %88, %91 : vector<2x8x128xf32>
    %cst_33 = arith.constant 0.000000e+00 : f32
    %93 = vector.broadcast %cst_33 : f32 to vector<2x8x128xf32>
    %94 = arith.maximumf %92, %93 : vector<2x8x128xf32>
    %95 = arith.subf %79, %76 : vector<2x1x128xf32>
    %96 = arith.subf %85, %82 : vector<2x8x1xf32>
    %97 = vector.broadcast %95 : vector<2x1x128xf32> to vector<2x8x128xf32>
    %98 = vector.broadcast %96 : vector<2x8x1xf32> to vector<2x8x128xf32>
    %99 = arith.addf %97, %98 : vector<2x8x128xf32>
    %100 = arith.subf %99, %94 : vector<2x8x128xf32>
    %cst_34 = arith.constant 9.99999971E-10 : f32
    %101 = vector.broadcast %cst_34 : f32 to vector<2x8x128xf32>
    %102 = arith.maximumf %100, %101 : vector<2x8x128xf32>
    %103 = arith.divf %94, %102 : vector<2x8x128xf32>
    %104 = vector.broadcast %79 : vector<2x1x128xf32> to vector<2x8x128xf32>
    %105 = vector.broadcast %85 : vector<2x8x1xf32> to vector<2x8x128xf32>
    %106 = arith.maximumf %104, %105 : vector<2x8x128xf32>
    %107 = vector.broadcast %76 : vector<2x1x128xf32> to vector<2x8x128xf32>
    %108 = vector.broadcast %82 : vector<2x8x1xf32> to vector<2x8x128xf32>
    %109 = arith.minimumf %107, %108 : vector<2x8x128xf32>
    %110 = arith.subf %106, %109 : vector<2x8x128xf32>
    %cst_35 = arith.constant 9.99999971E-10 : f32
    %111 = vector.broadcast %cst_35 : f32 to vector<2x8x128xf32>
    %112 = arith.maximumf %110, %111 : vector<2x8x128xf32>
    %113 = arith.subf %112, %102 : vector<2x8x128xf32>
    %114 = arith.divf %113, %112 : vector<2x8x128xf32>
    %115 = arith.subf %103, %114 : vector<2x8x128xf32>
    %cst_36 = arith.constant 5.000000e+00 : f32
    %116 = vector.broadcast %cst_36 : f32 to vector<2x8x128xf32>
    %117 = arith.mulf %116, %73 : vector<2x8x128xf32>
    %cst_37 = arith.constant 2.000000e+00 : f32
    %118 = vector.broadcast %cst_37 : f32 to vector<2x8x128xf32>
    %119 = arith.mulf %118, %60 : vector<2x8x128xf32>
    %120 = arith.addf %117, %119 : vector<2x8x128xf32>
    %cst_38 = arith.constant 2.000000e+00 : f32
    %121 = vector.broadcast %cst_38 : f32 to vector<2x8x128xf32>
    %122 = arith.mulf %121, %115 : vector<2x8x128xf32>
    %123 = arith.subf %120, %122 : vector<2x8x128xf32>
    %c0_39 = arith.constant 0 : index
    %c0_40 = arith.constant 0 : index
    %c0_41 = arith.constant 0 : index
    %c0_42 = arith.constant 0 : index
    %124 = vector.load %arg5[%c0_39, %c0_40, %c0_41, %c0_42] : memref<1x2x8x128xf32, #tpu.memory_space<vmem>>, vector<1x2x8x128xf32>
    %125 = vector.shape_cast %124 : vector<1x2x8x128xf32> to vector<2x8x128xf32>
    %126 = vector.shape_cast %123 : vector<2x8x128xf32> to vector<1x2x8x128xf32>
    tpu.vector_store %arg5[%c0_39, %c0_40, %c0_41, %c0_42], %126 {strides = array<i32>} : memref<1x2x8x128xf32, #tpu.memory_space<vmem>>, vector<1x2x8x128xf32>,
    return
  }
  func.func @transform_0(%arg0: i32) -> (i32, i32, i32, i32) {
    %c0_i32 = arith.constant 0 : i32
    %c0_i32_0 = arith.constant 0 : i32
    %c0_i32_1 = arith.constant 0 : i32
    %c0_i32_2 = arith.constant 0 : i32
    return %arg0, %c0_i32, %c0_i32_0, %c0_i32_1 : i32, i32, i32, i32
  }
  func.func @transform_1(%arg0: i32) -> (i32, i32, i32, i32) {
    %c0_i32 = arith.constant 0 : i32
    %c0_i32_0 = arith.constant 0 : i32
    %c0_i32_1 = arith.constant 0 : i32
    %c0_i32_2 = arith.constant 0 : i32
    return %arg0, %c0_i32, %c0_i32_0, %c0_i32_1 : i32, i32, i32, i32
  }
  func.func @transform_2(%arg0: i32) -> (i32, i32) {
    %c0_i32 = arith.constant 0 : i32
    %c0_i32_0 = arith.constant 0 : i32
    %c0_i32_1 = arith.constant 0 : i32
    return %c0_i32, %c0_i32_0 : i32, i32
  }
  func.func @transform_3(%arg0: i32) -> (i32, i32, i32) {
    %c0_i32 = arith.constant 0 : i32
    %c0_i32_0 = arith.constant 0 : i32
    %c0_i32_1 = arith.constant 0 : i32
    %c0_i32_2 = arith.constant 0 : i32
    return %c0_i32, %c0_i32_0, %c0_i32_1 : i32, i32, i32
  }
  func.func @transform_4(%arg0: i32) -> (i32, i32, i32, i32) {
    %c0_i32 = arith.constant 0 : i32
    %c0_i32_0 = arith.constant 0 : i32
    %c0_i32_1 = arith.constant 0 : i32
    %c0_i32_2 = arith.constant 0 : i32
    return %arg0, %c0_i32, %c0_i32_0, %c0_i32_1 : i32, i32, i32, i32
  }
  func.func @transform_5(%arg0: i32) -> (i32, i32, i32) {
    %c0_i32 = arith.constant 0 : i32
    %c0_i32_0 = arith.constant 0 : i32
    %c0_i32_1 = arith.constant 0 : i32
    return %arg0, %c0_i32, %c0_i32_0 : i32, i32, i32
  }
}

</mosaic_0001>

<llo_original>
// kernel: _device_stage1.1
$region0: #{_device_stage1.1}
  #allocation0 [shape = 'u32[]', space=smem, size = 0x4, offset = 0x4, fixed_abs, tag = 'smem constant byte address 0x4 - core index']
  #allocation1 [shape = 'u32[144,128]{1,0:T(1,128)}', space=vmem, size = 0x12000, scoped, tag = 'internal scratch']
  %s0 = inlined_call_operand.vmem [shape: f32[2,2,7,128], index: 0, kind: input, shape index: {}]
  %s1 = inlined_call_operand.vmem [shape: f32[2,2,2,128], index: 1, kind: input, shape index: {}]
  %s2 = inlined_call_operand.vmem [shape: s32[2,8], index: 2, kind: input, shape index: {}]
  %s3 = inlined_call_operand.vmem [shape: f32[2,8,2], index: 3, kind: input, shape index: {}]
  %s4 = inlined_call_operand.hbm [shape: f32[2,2,8,128], index: 4, kind: output, shape index: {0}]
  %s5 = inlined_call_operand.vmem [shape: f32[2,2,1], index: 5, kind: output, shape index: {1}]
  %6 = xla_tuple %s4, %s5
  %s7 = sld [smem:[#allocation0]]
  $region57: #{_device_stage1.1} parent=0
    _
  %s9 = ssub.s32 1, %s7
  %s10 = scalar_select 0, %s9, %s7
  $region1: #{_device_stage1.1} parent=0
    #allocation2 [shape = 'u8[16384]{0}', space=vmem, size = 0x4000, scoped, tag = 'output window, operand 0']
    #allocation3 [shape = 's32[2]{0}', space=sflag, size = 0x8, scoped, tag = 'scoped memory for _device_stage1.1']
    %11 = vsyncpa [#allocation3], 0
    %s12 = scalar_lea.sflag [#allocation3], 1
    %13 = vsyncpa %s12, 0
    loop: start=0, step=1, limit=4
    $region2: #{_device_stage1.1} parent=1 // loop_pre_header
      _
    $region3: #{_device_stage1.1} parent=1 // loop_header
      %s15 = sphi 0, %s19
      %p16 = scmp.ge.s32.totalorder %s15, 4
      %s25 = sphi 0, %s27
      %s28 = sphi 0, %s25
      %s29 = sphi 0, %s28
      %s45 = sphi 0, %s29
      %s51 = sphi 0, %s53
      %s54 = sphi 0, %s51
      %s55 = sphi 0, %s54
      %s71 = sphi 0, %s55
      %s75 = sphi 0, %s75
      %s77 = sphi 0, %s75
      %s78 = sphi 0, %s77
      %s92 = sphi 0, %s78
      %s96 = sphi 0, %s96
      %s98 = sphi 0, %s96
      %s99 = sphi 0, %s98
      %s113 = sphi 0, %s99
      %s119 = sphi 0, %s121
      %s122 = sphi 0, %s119
      %s123 = sphi 0, %s122
      %s139 = sphi 0, %s123
      %s145 = sphi 0, %s147
      %s148 = sphi 0, %s145
      %s149 = sphi 0, %s148
      %s165 = sphi 0, %s149
    $region4: #{_device_stage1.1} parent=1 // loop_header_branch
      %18 = sbr.rel (%p16) target = $region8
    $region5: #{_device_stage1.1} parent=1 // loop_body
      %s20 = ssub.s32 %s15, 1
      %s21 = ssub.s32 %s15, 2
      %s22 = sadd.s32 %s15, 1
      %s23 = ssub.s32 %s15, %s22
      %p24 = scmp.eq.s32.totalorder %s23, 0
      %s26 = sadd.s32 %s25, 1
      %s27 = scalar_select %p24, %s25, %s26
      %p30 = pneg %p24
      %p31 = scmp.eq.s32.totalorder %s15, 1
      %p32 = por %p30, %p31
      %p33 = scmp.ne.s32.totalorder %s25, %s28
      %p34 = scmp.eq.s32.totalorder %s15, 0
      %p35 = por %p33, %p34
      %p36 = scmp.ne.s32.totalorder %s25, %s28
      %p37 = scmp.eq.s32.totalorder %s20, 1
      %p38 = por %p36, %p37
      %p39 = scmp.ne.s32.totalorder %s28, %s29
      %p40 = scmp.eq.s32.totalorder %s20, 0
      %p41 = por %p39, %p40
      %p42 = scmp.ne.s32.totalorder %s28, %s29
      %p43 = scmp.eq.s32.totalorder %s21, 1
      %p44 = por %p42, %p43
      %p46 = scmp.ne.s32.totalorder %s29, %s45
      %p47 = scmp.eq.s32.totalorder %s21, 0
      %p48 = por %p46, %p47
      %s49 = ssub.s32 %s15, %s22
      %p50 = scmp.eq.s32.totalorder %s49, 0
      %s52 = sadd.s32 %s51, 1
      %s53 = scalar_select %p50, %s51, %s52
      %p56 = pneg %p50
      %p57 = scmp.eq.s32.totalorder %s15, 1
      %p58 = por %p56, %p57
      %p59 = scmp.ne.s32.totalorder %s51, %s54
      %p60 = scmp.eq.s32.totalorder %s15, 0
      %p61 = por %p59, %p60
      %p62 = scmp.ne.s32.totalorder %s51, %s54
      %p63 = scmp.eq.s32.totalorder %s20, 1
      %p64 = por %p62, %p63
      %p65 = scmp.ne.s32.totalorder %s54, %s55
      %p66 = scmp.eq.s32.totalorder %s20, 0
      %p67 = por %p65, %p66
      %p68 = scmp.ne.s32.totalorder %s54, %s55
      %p69 = scmp.eq.s32.totalorder %s21, 1
      %p70 = por %p68, %p69
      %p72 = scmp.ne.s32.totalorder %s55, %s71
      %p73 = scmp.eq.s32.totalorder %s21, 0
      %p74 = por %p72, %p73
      %s76 = sadd.s32 %s75, 1
      %p79 = scmp.eq.s32.totalorder %s15, 1
      %p80 = scmp.ne.s32.totalorder %s75, %s77
      %p81 = scmp.eq.s32.totalorder %s15, 0
      %p82 = por %p80, %p81
      %p83 = scmp.ne.s32.totalorder %s75, %s77
      %p84 = scmp.eq.s32.totalorder %s20, 1
      %p85 = por %p83, %p84
      %p86 = scmp.ne.s32.totalorder %s77, %s78
      %p87 = scmp.eq.s32.totalorder %s20, 0
      %p88 = por %p86, %p87
      %p89 = scmp.ne.s32.totalorder %s77, %s78
      %p90 = scmp.eq.s32.totalorder %s21, 1
      %p91 = por %p89, %p90
      %p93 = scmp.ne.s32.totalorder %s78, %s92
      %p94 = scmp.eq.s32.totalorder %s21, 0
      %p95 = por %p93, %p94
      %s97 = sadd.s32 %s96, 1
      %p100 = scmp.eq.s32.totalorder %s15, 1
      %p101 = scmp.ne.s32.totalorder %s96, %s98
      %p102 = scmp.eq.s32.totalorder %s15, 0
      %p103 = por %p101, %p102
      %p104 = scmp.ne.s32.totalorder %s96, %s98
      %p105 = scmp.eq.s32.totalorder %s20, 1
      %p106 = por %p104, %p105
      %p107 = scmp.ne.s32.totalorder %s98, %s99
      %p108 = scmp.eq.s32.totalorder %s20, 0
      %p109 = por %p107, %p108
      %p110 = scmp.ne.s32.totalorder %s98, %s99
      %p111 = scmp.eq.s32.totalorder %s21, 1
      %p112 = por %p110, %p111
      %p114 = scmp.ne.s32.totalorder %s99, %s113
      %p115 = scmp.eq.s32.totalorder %s21, 0
      %p116 = por %p114, %p115
      %s117 = ssub.s32 %s15, %s22
      %p118 = scmp.eq.s32.totalorder %s117, 0
      %s120 = sadd.s32 %s119, 1
      %s121 = scalar_select %p118, %s119, %s120
      %p124 = pneg %p118
      %p125 = scmp.eq.s32.totalorder %s15, 1
      %p126 = por %p124, %p125
      %p127 = scmp.ne.s32.totalorder %s119, %s122
      %p128 = scmp.eq.s32.totalorder %s15, 0
      %p129 = por %p127, %p128
      %p130 = scmp.ne.s32.totalorder %s119, %s122
      %p131 = scmp.eq.s32.totalorder %s20, 1
      %p132 = por %p130, %p131
      %p133 = scmp.ne.s32.totalorder %s122, %s123
      %p134 = scmp.eq.s32.totalorder %s20, 0
      %p135 = por %p133, %p134
      %p136 = scmp.ne.s32.totalorder %s122, %s123
      %p137 = scmp.eq.s32.totalorder %s21, 1
      %p138 = por %p136, %p137
      %p140 = scmp.ne.s32.totalorder %s123, %s139
      %p141 = scmp.eq.s32.totalorder %s21, 0
      %p142 = por %p140, %p141
      %s143 = ssub.s32 %s15, %s22
      %p144 = scmp.eq.s32.totalorder %s143, 0
      %s146 = sadd.s32 %s145, 1
      %s147 = scalar_select %p144, %s145, %s146
      %p150 = pneg %p144
      %p151 = scmp.eq.s32.totalorder %s15, 1
      %p152 = por %p150, %p151
      %p153 = scmp.ne.s32.totalorder %s145, %s148
      %p154 = scmp.eq.s32.totalorder %s15, 0
      %p155 = por %p153, %p154
      %p156 = scmp.ne.s32.totalorder %s145, %s148
      %p157 = scmp.eq.s32.totalorder %s20, 1
      %p158 = por %p156, %p157
      %p159 = scmp.ne.s32.totalorder %s148, %s149
      %p160 = scmp.eq.s32.totalorder %s20, 0
      %p161 = por %p159, %p160
      %p162 = scmp.ne.s32.totalorder %s148, %s149
      %p163 = scmp.eq.s32.totalorder %s21, 1
      %p164 = por %p162, %p163
      %p166 = scmp.ne.s32.totalorder %s149, %s165
      %p167 = scmp.eq.s32.totalorder %s21, 0
      %p168 = por %p166, %p167
      %p169 = scmp.le.s32.totalorder 1, %s15
      %p170 = scmp.lt.s32.totalorder %s15, 3
      %p171 = pnand %p169, %p170
      %p172 = pneg %p171
      // Predicated region
      $region9: #{_device_stage1.1} parent=5 // pred_check
        _
      $region10: #{_device_stage1.1} parent=5 // pred_check_branch
        %174 = sbr.rel (%p171) target = $region12
      $region11: #{_device_stage1.1} parent=5 // pred_region
        %s175 = ssub.s32 %s15, 1
        // Predicated region
        $region13: #{_device_stage1.1} parent=11 // pred_check
          %p176 = pneg %p88
        $region14: #{_device_stage1.1} parent=11 // pred_check_branch
          %178 = sbr.rel (%p176) target = $region16
        $region15: #{_device_stage1.1} parent=11 // pred_region
          _
        $region16: #{_device_stage1.1} parent=11 // pred_fallthru
          _
        // Predicated region
        $region17: #{_device_stage1.1} parent=11 // pred_check
          %p179 = pneg %p109
        $region18: #{_device_stage1.1} parent=11 // pred_check_branch
          %181 = sbr.rel (%p179) target = $region20
        $region19: #{_device_stage1.1} parent=11 // pred_region
          _
        $region20: #{_device_stage1.1} parent=11 // pred_fallthru
          _
      $region12: #{_device_stage1.1} parent=5 // pred_fallthru
        _
      %p182 = scmp.lt.s32.totalorder %s15, 2
      // Predicated region
      $region21: #{_device_stage1.1} parent=5 // pred_check
        %p183 = pneg %p182
      $region22: #{_device_stage1.1} parent=5 // pred_check_branch
        %185 = sbr.rel (%p183) target = $region24
      $region23: #{_device_stage1.1} parent=5 // pred_region
        // Predicated region
        $region25: #{_device_stage1.1} parent=23 // pred_check
          %p186 = pneg %p35
        $region26: #{_device_stage1.1} parent=23 // pred_check_branch
          %188 = sbr.rel (%p186) target = $region28
        $region27: #{_device_stage1.1} parent=23 // pred_region
          %p189 = scmp.lt.s32.totalorder %s15, 1
          %s190 = scalar_select %p189, %s15, 1
          %s191 = smul.addr %s190, 2
          %s192 = smul.addr %s191, 8
          %s193 = scalar_lea.vmem %s0, %s192
        $region28: #{_device_stage1.1} parent=23 // pred_fallthru
          _
        // Predicated region
        $region29: #{_device_stage1.1} parent=23 // pred_check
          %p194 = pneg %p61
        $region30: #{_device_stage1.1} parent=23 // pred_check_branch
          %196 = sbr.rel (%p194) target = $region32
        $region31: #{_device_stage1.1} parent=23 // pred_region
          %p197 = scmp.lt.s32.totalorder %s15, 1
          %s198 = scalar_select %p197, %s15, 1
          %s199 = smul.addr %s198, 2
          %s200 = smul.addr %s199, 2
          %s201 = scalar_lea.vmem %s1, %s200
        $region32: #{_device_stage1.1} parent=23 // pred_fallthru
          _
      $region24: #{_device_stage1.1} parent=5 // pred_fallthru
        _
      %p202 = scmp.le.s32.totalorder 1, %s15
      %p203 = scmp.lt.s32.totalorder %s15, 3
      %p204 = pnand %p202, %p203
      %p205 = pneg %p204
      // Predicated region
      $region33: #{_device_stage1.1} parent=5 // pred_check
        _
      $region34: #{_device_stage1.1} parent=5 // pred_check_branch
        %207 = sbr.rel (%p204) target = $region36
      $region35: #{_device_stage1.1} parent=5 // pred_region
        %s208 = ssub.s32 %s15, 1
        %p209 = scmp.lt.s32.totalorder %s20, 1
        %s210 = scalar_select %p209, %s20, 1
        %s211 = smul.addr %s210, 2
        %s212 = smul.addr %s211, 8
        %s213 = scalar_lea.vmem %s0, %s212
        %p214 = pneg %p41
        %p215 = pneg %p38
        %p216 = scmp.lt.s32.totalorder %s20, 1
        %s217 = scalar_select %p216, %s20, 1
        %s218 = smul.addr %s217, 2
        %s219 = smul.addr %s218, 2
        %s220 = scalar_lea.vmem %s1, %s219
        %p221 = pneg %p67
        %p222 = pneg %p64
        %p223 = pneg %p88
        %p224 = pneg %p85
        %p225 = pneg %p109
        %p226 = pneg %p106
        %p227 = pneg %p135
        %p228 = pneg %p132
        %s229 = sand.u32 %s122, 1
        %s230 = scalar_lea.sflag [#allocation3], %s229
        %s231 = sand.u32 %s122, 1
        %s232 = smul.addr %s231, 16
        %s233 = scalar_lea.vmem [#allocation2], %s232
        %p234 = pneg %p161
        %p235 = pneg %p158
        %p236 = scmp.lt.s32.totalorder %s20, 1
        %s237 = scalar_select %p236, %s20, 1
        %s238 = smul.addr %s237, 2
        %s239 = scalar_lea.vmem %s5, %s238
        %p240 = scmp.lt.s32.totalorder %s20, 1
        %s241 = scalar_select %p240, %s20, 1
        %s242 = smul.addr %s241, 2
        %s243 = smul.addr %s242, 8
        %s244 = scalar_lea.vmem %s0, %s243
        %p245 = scmp.lt.s32.totalorder %s20, 1
        %s246 = scalar_select %p245, %s20, 1
        %s247 = smul.addr %s246, 2
        %s248 = smul.addr %s247, 2
        %s249 = scalar_lea.vmem %s1, %s248
        %p250 = scmp.lt.s32.totalorder %s20, 1
        %s251 = scalar_select %p250, %s20, 1
        %s252 = smul.addr %s251, 2
        %s253 = scalar_lea.vmem %s5, %s252
        %v254 = vld [vmem:[%s244] sm:$0x7f]
        %v255 = vld [vmem:[%s244 + $0x8] sm:$0x7f]
        %v256 = vld [vmem:[%s249] sm:$0x3]
        %v257 = vld [vmem:[%s249 + $0x2] sm:$0x3]
        %v258 = vld [vmem:[%s2] sm:$0x3]
        %v259 = vld [vmem:[%s3] sm:$0xff]
        %v260 = vld [vmem:[%s3 + $0x8] sm:$0xff]
        %v261 = vlaneseq
        %v262 = vand.u32 %v261, 127
        %vm263 = vcmp.lt.s32.totalorder %v262, 16
        %vm264 = vcmask 1045504
        %v265 = vsel %vm264, %v254, -inf
        %v266 = vrot.slane %v265, 4
        %v267 = vmax.f32 %v265, %v266
        %v268 = vrot.slane %v267, 2
        %v269 = vmax.f32 %v267, %v268
        %v270 = vrot.slane %v269, 1
        %v271 = vmax.f32 %v269, %v270
        %v272 = vsel %vm264, %v255, -inf
        %v273 = vrot.slane %v272, 4
        %v274 = vmax.f32 %v272, %v273
        %v275 = vrot.slane %v274, 2
        %v276 = vmax.f32 %v274, %v275
        %v277 = vrot.slane %v276, 1
        %v278 = vmax.f32 %v276, %v277
        %vm279 = vcmp.ge.f32.partialorder %v271, %v254
        %vm280 = vcmp.ge.f32.partialorder %v278, %v255
        %vm281 = vmand %vm279, %vm263
        %vm282 = vmand %vm280, %vm263
        %v283 = vsel %vm281, 1.0, 0.0
        %v284 = vsel %vm282, 1.0, 0.0
        %vm285 = vcmask 1046534
        %v286 = vsel %vm285, %v283, 0.0
        %287 = vadd.xlane.f32.xlu0 %v286
        %v288 = vpop.xlane.xlu0 %287
        %v289 = vsel %vm285, %v284, 0.0
        %290 = vadd.xlane.f32.xlu0 %v289
        %v291 = vpop.xlane.xlu0 %290
        %v294 = vrot.slane %v291, 7
        %vm295 = vcmask 1047559
        %v296 = vsel %vm295, %v294, %v288
        %vm298 = vcmask 7174
        %299 = vst.msk [vmem:[%s253 - $0x6] sm:$0xc0] %vm298, %v296
        %v300 = vlaneseq
        %v301 = vshrl.u32 %v300, 7
        %v302 = vsub.s32 0, %v301
        %v303 = vrot.slane %v258, %v302
        %305 = vbcast.lane.b32.xlu0 %v303, 256
        %v306 = vpop.permute.xlu0 %305
        %v307 = vlaneseq
        %v308 = vshrl.u32 %v307, 7
        %v309 = vsub.s32 1, %v308
        %v310 = vrot.slane %v258, %v309
        %312 = vbcast.lane.b32.xlu0 %v310, 256
        %v313 = vpop.permute.xlu0 %312
        %vm314 = vcmp.eq.s32.totalorder %v262, %v306
        %vm315 = vcmp.eq.s32.totalorder %v262, %v313
        %v316 = vsel %vm314, 1, 0
        %v317 = vsel %vm315, 1, 0
        %v318 = vcvt.s32.f32 %v316
        %v319 = vcvt.s32.f32 %v317
        %vm320 = vcmask 56320
        %v322 = vsel %vm320, %v318, 0
        %vm324 = vcmask 1046528
        %v326 = vsel %vm324, %v254, 0
        %328 = vmatprep.subr.mxu0 0.0
        %329 = vmatpush1.msra.mxu0 0.0
        %330 = vmatprep.subr.mxu0 0.0
        %331 = vmatpush1.msra.mxu0 0.0
        %332 = vmatprep.subr.mxu0 0.0
        %333 = vmatpush1.msra.mxu0 0.0
        %334 = vmatprep.subr.mxu0 0.0
        %335 = vmatpush1.msra.mxu0 0.0
        %336 = vmatprep.subr.mxu0 0.0
        %337 = vmatpush1.msra.mxu0 0.0
        %338 = vmatprep.subr.mxu0 0.0
        %339 = vmatpush1.msra.mxu0 0.0
        %340 = vmatprep.subr.mxu0 0.0
        %341 = vmatpush1.msra.mxu0 0.0
        %342 = vmatprep.subr.mxu0 0.0
        %343 = vmatpush1.msra.mxu0 0.0
        %344 = vmatprep.subr.mxu0 0.0
        %345 = vmatpush1.msra.mxu0 0.0
        %346 = vmatprep.subr.mxu0 0.0
        %347 = vmatpush1.msra.mxu0 0.0
        %348 = vmatprep.subr.mxu0 0.0
        %349 = vmatpush1.msra.mxu0 0.0
        %350 = vmatprep.subr.mxu0 0.0
        %351 = vmatpush1.msra.mxu0 0.0
        %352 = vmatprep.subr.mxu0 0.0
        %353 = vmatpush1.msra.mxu0 0.0
        %354 = vmatprep.subr.mxu0 0.0
        %355 = vmatpush1.msra.mxu0 0.0
        %356 = vmatprep.subr.mxu0 0.0
        %357 = vmatpush1.msra.mxu0 0.0
        %358 = vmatprep.subr.mxu0 0.0
        %359 = vmatpush1.msra.mxu0 %v326
        %360 = vmatprep.subr.mxu0 0.0
        %361 = vmatpush2.msra.mxu0 0.0
        %362 = vmatprep.subr.mxu0 0.0
        %363 = vmatpush2.msra.mxu0 0.0
        %364 = vmatprep.subr.mxu0 0.0
        %365 = vmatpush2.msra.mxu0 0.0
        %366 = vmatprep.subr.mxu0 0.0
        %367 = vmatpush2.msra.mxu0 0.0
        %368 = vmatprep.subr.mxu0 0.0
        %369 = vmatpush2.msra.mxu0 0.0
        %370 = vmatprep.subr.mxu0 0.0
        %371 = vmatpush2.msra.mxu0 0.0
        %372 = vmatprep.subr.mxu0 0.0
        %373 = vmatpush2.msra.mxu0 0.0
        %374 = vmatprep.subr.mxu0 0.0
        %375 = vmatpush2.msra.mxu0 0.0
        %376 = vmatprep.subr.mxu0 0.0
        %377 = vmatpush2.msra.mxu0 0.0
        %378 = vmatprep.subr.mxu0 0.0
        %379 = vmatpush2.msra.mxu0 0.0
        %380 = vmatprep.subr.mxu0 0.0
        %381 = vmatpush2.msra.mxu0 0.0
        %382 = vmatprep.subr.mxu0 0.0
        %383 = vmatpush2.msra.mxu0 0.0
        %384 = vmatprep.subr.mxu0 0.0
        %385 = vmatpush2.msra.mxu0 0.0
        %386 = vmatprep.subr.mxu0 0.0
        %387 = vmatpush2.msra.mxu0 0.0
        %388 = vmatprep.subr.mxu0 0.0
        %389 = vmatpush2.msra.mxu0 0.0
        %390 = vmatprep.subr.mxu0 0.0
        %391 = vmatpush2.msra.mxu0 0.0
        %392 = vmatprep.mubr.f32.mxu0 0.0
        %393 = vmatmul.mubr.f32.gmra.mxu0 %v322
        %v394 = vpop.f32.mrf.mxu0
        %v395 = vadd.f32 0.0, %v394
        %v396 = vpop.f32.mrf.mxu0
        %397 = vdwg.mxu0
        %v399 = vsel %vm320, %v319, 0
        %v402 = vsel %vm324, %v255, 0
        %404 = vmatprep.subr.mxu0 0.0
        %405 = vmatpush1.msra.mxu0 0.0
        %406 = vmatprep.subr.mxu0 0.0
        %407 = vmatpush1.msra.mxu0 0.0
        %408 = vmatprep.subr.mxu0 0.0
        %409 = vmatpush1.msra.mxu0 0.0
        %410 = vmatprep.subr.mxu0 0.0
        %411 = vmatpush1.msra.mxu0 0.0
        %412 = vmatprep.subr.mxu0 0.0
        %413 = vmatpush1.msra.mxu0 0.0
        %414 = vmatprep.subr.mxu0 0.0
        %415 = vmatpush1.msra.mxu0 0.0
        %416 = vmatprep.subr.mxu0 0.0
        %417 = vmatpush1.msra.mxu0 0.0
        %418 = vmatprep.subr.mxu0 0.0
        %419 = vmatpush1.msra.mxu0 0.0
        %420 = vmatprep.subr.mxu0 0.0
        %421 = vmatpush1.msra.mxu0 0.0
        %422 = vmatprep.subr.mxu0 0.0
        %423 = vmatpush1.msra.mxu0 0.0
        %424 = vmatprep.subr.mxu0 0.0
        %425 = vmatpush1.msra.mxu0 0.0
        %426 = vmatprep.subr.mxu0 0.0
        %427 = vmatpush1.msra.mxu0 0.0
        %428 = vmatprep.subr.mxu0 0.0
        %429 = vmatpush1.msra.mxu0 0.0
        %430 = vmatprep.subr.mxu0 0.0
        %431 = vmatpush1.msra.mxu0 0.0
        %432 = vmatprep.subr.mxu0 0.0
        %433 = vmatpush1.msra.mxu0 0.0
        %434 = vmatprep.subr.mxu0 0.0
        %435 = vmatpush1.msra.mxu0 %v402
        %436 = vmatprep.subr.mxu0 0.0
        %437 = vmatpush2.msra.mxu0 0.0
        %438 = vmatprep.subr.mxu0 0.0
        %439 = vmatpush2.msra.mxu0 0.0
        %440 = vmatprep.subr.mxu0 0.0
        %441 = vmatpush2.msra.mxu0 0.0
        %442 = vmatprep.subr.mxu0 0.0
        %443 = vmatpush2.msra.mxu0 0.0
        %444 = vmatprep.subr.mxu0 0.0
        %445 = vmatpush2.msra.mxu0 0.0
        %446 = vmatprep.subr.mxu0 0.0
        %447 = vmatpush2.msra.mxu0 0.0
        %448 = vmatprep.subr.mxu0 0.0
        %449 = vmatpush2.msra.mxu0 0.0
        %450 = vmatprep.subr.mxu0 0.0
        %451 = vmatpush2.msra.mxu0 0.0
        %452 = vmatprep.subr.mxu0 0.0
        %453 = vmatpush2.msra.mxu0 0.0
        %454 = vmatprep.subr.mxu0 0.0
        %455 = vmatpush2.msra.mxu0 0.0
        %456 = vmatprep.subr.mxu0 0.0
        %457 = vmatpush2.msra.mxu0 0.0
        %458 = vmatprep.subr.mxu0 0.0
        %459 = vmatpush2.msra.mxu0 0.0
        %460 = vmatprep.subr.mxu0 0.0
        %461 = vmatpush2.msra.mxu0 0.0
        %462 = vmatprep.subr.mxu0 0.0
        %463 = vmatpush2.msra.mxu0 0.0
        %464 = vmatprep.subr.mxu0 0.0
        %465 = vmatpush2.msra.mxu0 0.0
        %466 = vmatprep.subr.mxu0 0.0
        %467 = vmatpush2.msra.mxu0 0.0
        %468 = vmatprep.mubr.f32.mxu0 0.0
        %469 = vmatmul.mubr.f32.gmra.mxu0 %v399
        %v470 = vpop.f32.mrf.mxu0
        %v471 = vadd.f32 0.0, %v470
        %v472 = vpop.f32.mrf.mxu0
        %473 = vdwg.mxu0
        %v474 = vand.u32 2147483647, %v395
        %v475 = vand.u32 2147483647, %v471
        %v476 = vsub.f32 0.0, %v474
        %v477 = vsub.f32 0.0, %v475
        %v478 = vmul.f32 %v476, 1.442695
        %v479 = vpow.pop %v478
        %v480 = vmul.f32 %v477, 1.442695
        %v481 = vpow.pop %v480
        %v482 = vadd.f32 %v479, 1.0
        %v483 = vadd.f32 %v481, 1.0
        %v484 = vlog2.pop %v482
        %v485 = vmul.f32 %v484, 0.6931472
        %v486 = vlog2.pop %v483
        %v487 = vmul.f32 %v486, 0.6931472
        %v488 = vrcp.pop %v482
        %v489 = vmul.f32 1.0, %v488
        %v490 = vrcp.pop %v483
        %v491 = vmul.f32 1.0, %v490
        %vm492 = vcmp.ge.f32.partialorder %v395, 0.0
        %vm493 = vcmp.ge.f32.partialorder %v471, 0.0
        %v494 = vmul.f32 %v479, %v489
        %v495 = vmul.f32 %v481, %v491
        %v496 = vsel %vm492, %v489, %v494
        %v497 = vsel %vm493, %v491, %v495
        %v498 = vsub.f32 1.0, %v496
        %v499 = vsub.f32 1.0, %v497
        %v500 = vmul.f32 %v496, 0.75
        %v501 = vmul.f32 %v497, 0.75
        %v502 = vmul.f32 %v500, %v496
        %v503 = vmul.f32 %v501, %v497
        %v504 = vmax.f32 %v395, 0.0
        %v505 = vmax.f32 %v471, 0.0
        %v506 = vadd.f32 %v504, %v485
        %v507 = vadd.f32 %v505, %v487
        %v508 = vmul.f32 %v502, %v506
        %v509 = vmul.f32 %v503, %v507
        %v510 = vmul.f32 %v498, 0.25
        %v511 = vmul.f32 %v499, 0.25
        %v512 = vmul.f32 %v510, %v498
        %v513 = vmul.f32 %v511, %v499
        %v514 = vmin.f32 %v395, 0.0
        %v515 = vmin.f32 %v471, 0.0
        %v516 = vsub.f32 %v485, %v514
        %v517 = vsub.f32 %v487, %v515
        %v518 = vmul.f32 %v512, %v516
        %v519 = vmul.f32 %v513, %v517
        %v520 = vsub.f32 %v518, %v508
        %v521 = vsub.f32 %v519, %v509
        %v522 = vlaneseq
        %v523 = vshrl.u32 %v522, 7
        %v524 = vsub.s32 0, %v523
        %v525 = vrot.slane %v256, %v524
        %v526 = vlaneseq
        %v527 = vshrl.u32 %v526, 7
        %v528 = vsub.s32 0, %v527
        %v529 = vrot.slane %v257, %v528
        %531 = vset.pattern.permute.xlu0 0
        %532 = vperm.xlu0 %531, %v259
        %v533 = vpop.permute.xlu0 %532
        %536 = vset.pattern.permute.xlu0 0
        %537 = vperm.xlu0 %536, %v260
        %v538 = vpop.permute.xlu0 %537
        %v540 = vsub.f32 %v525, %v533
        %v541 = vsub.f32 %v529, %v538
        %v542 = vand.u32 2147483647, %v540
        %v543 = vand.u32 2147483647, %v541
        %v544 = vlaneseq
        %v545 = vshrl.u32 %v544, 7
        %v546 = vsub.s32 1, %v545
        %v547 = vrot.slane %v256, %v546
        %v548 = vlaneseq
        %v549 = vshrl.u32 %v548, 7
        %v550 = vsub.s32 1, %v549
        %v551 = vrot.slane %v257, %v550
        %552 = vset.pattern.permute.xlu0 1
        %553 = vperm.xlu0 %552, %v259
        %v554 = vpop.permute.xlu0 %553
        %556 = vset.pattern.permute.xlu0 1
        %557 = vperm.xlu0 %556, %v260
        %v558 = vpop.permute.xlu0 %557
        %v560 = vsub.f32 %v547, %v554
        %v561 = vsub.f32 %v551, %v558
        %v562 = vand.u32 2147483647, %v560
        %v563 = vand.u32 2147483647, %v561
        %v564 = vadd.f32 %v542, %v562
        %v565 = vadd.f32 %v543, %v563
        %v566 = vmul.f32 %v256, 0.5
        %v567 = vmul.f32 %v257, 0.5
        %v570 = vrot.slane %v566, 1
        %v571 = vrot.slane %v567, 1
        %v574 = vsub.f32 %v256, %v570
        %v575 = vsub.f32 %v257, %v571
        %v576 = vadd.f32 %v256, %v570
        %v577 = vadd.f32 %v257, %v571
        %v578 = vmul.f32 %v259, 0.5
        %v579 = vmul.f32 %v260, 0.5
        %582 = vrot.lane.b32.xlu0 %v578, 127
        %v583 = vpop.permute.xlu0 %582
        %584 = vrot.lane.b32.xlu0 %v579, 127
        %v585 = vpop.permute.xlu0 %584
        %v588 = vsub.f32 %v259, %v583
        %v589 = vsub.f32 %v260, %v585
        %v590 = vadd.f32 %v259, %v583
        %v591 = vadd.f32 %v260, %v585
        %v592 = vlaneseq
        %v593 = vshrl.u32 %v592, 7
        %v594 = vsub.s32 0, %v593
        %v595 = vrot.slane %v576, %v594
        %v596 = vlaneseq
        %v597 = vshrl.u32 %v596, 7
        %v598 = vsub.s32 0, %v597
        %v599 = vrot.slane %v577, %v598
        %601 = vset.pattern.permute.xlu0 0
        %602 = vperm.xlu0 %601, %v590
        %v603 = vpop.permute.xlu0 %602
        %606 = vset.pattern.permute.xlu0 0
        %607 = vperm.xlu0 %606, %v591
        %v608 = vpop.permute.xlu0 %607
        %v610 = vmin.f32 %v595, %v603
        %v611 = vmin.f32 %v599, %v608
        %v612 = vlaneseq
        %v613 = vshrl.u32 %v612, 7
        %v614 = vsub.s32 0, %v613
        %v615 = vrot.slane %v574, %v614
        %v616 = vlaneseq
        %v617 = vshrl.u32 %v616, 7
        %v618 = vsub.s32 0, %v617
        %v619 = vrot.slane %v575, %v618
        %621 = vset.pattern.permute.xlu0 0
        %622 = vperm.xlu0 %621, %v588
        %v623 = vpop.permute.xlu0 %622
        %626 = vset.pattern.permute.xlu0 0
        %627 = vperm.xlu0 %626, %v589
        %v628 = vpop.permute.xlu0 %627
        %v630 = vmax.f32 %v615, %v623
        %v631 = vmax.f32 %v619, %v628
        %v632 = vsub.f32 %v610, %v630
        %v633 = vsub.f32 %v611, %v631
        %v634 = vmax.f32 %v632, 0.0
        %v635 = vmax.f32 %v633, 0.0
        %v636 = vsub.f32 %v576, %v574
        %v637 = vsub.f32 %v577, %v575
        %v638 = vsub.f32 %v590, %v588
        %v639 = vsub.f32 %v591, %v589
        %v640 = vlaneseq
        %v641 = vshrl.u32 %v640, 7
        %v642 = vsub.s32 0, %v641
        %v643 = vrot.slane %v636, %v642
        %v644 = vlaneseq
        %v645 = vshrl.u32 %v644, 7
        %v646 = vsub.s32 0, %v645
        %v647 = vrot.slane %v637, %v646
        %649 = vset.pattern.permute.xlu0 0
        %650 = vperm.xlu0 %649, %v638
        %v651 = vpop.permute.xlu0 %650
        %654 = vset.pattern.permute.xlu0 0
        %655 = vperm.xlu0 %654, %v639
        %v656 = vpop.permute.xlu0 %655
        %v658 = vadd.f32 %v643, %v651
        %v659 = vadd.f32 %v647, %v656
        %v660 = vsub.f32 %v658, %v634
        %v661 = vsub.f32 %v659, %v635
        %v662 = vmax.f32 %v660, 1e-09
        %v663 = vmax.f32 %v661, 1e-09
        %v664 = vrcp.pop %v662
        %v665 = vmul.f32 %v634, %v664
        %v666 = vrcp.pop %v663
        %v667 = vmul.f32 %v635, %v666
        %v668 = vmax.f32 %v595, %v603
        %v669 = vmax.f32 %v599, %v608
        %v670 = vmin.f32 %v615, %v623
        %v671 = vmin.f32 %v619, %v628
        %v672 = vsub.f32 %v668, %v670
        %v673 = vsub.f32 %v669, %v671
        %v674 = vmax.f32 %v672, 1e-09
        %v675 = vmax.f32 %v673, 1e-09
        %v676 = vsub.f32 %v674, %v662
        %v677 = vsub.f32 %v675, %v663
        %v678 = vrcp.pop %v674
        %v679 = vmul.f32 %v676, %v678
        %v680 = vrcp.pop %v675
        %v681 = vmul.f32 %v677, %v680
        %v682 = vsub.f32 %v665, %v679
        %v683 = vsub.f32 %v667, %v681
        %v684 = vmul.f32 %v564, 5.0
        %v685 = vmul.f32 %v565, 5.0
        %v686 = vmul.f32 %v520, 2.0
        %v687 = vmul.f32 %v521, 2.0
        %v688 = vadd.f32 %v684, %v686
        %v689 = vadd.f32 %v685, %v687
        %v690 = vmul.f32 %v682, 2.0
        %v691 = vmul.f32 %v683, 2.0
        %v692 = vsub.f32 %v688, %v690
        %v693 = vsub.f32 %v689, %v691
        %694 = vst [vmem:[%s233] sm:$0xff] %v692
        %695 = vst [vmem:[%s233 + $0x8] sm:$0xff] %v693
        %s696 = sand.u32 %s122, 1
        %s697 = scalar_lea.sflag [#allocation3], %s696
        %s698 = sand.u32 %s122, 1
        %s699 = smul.addr %s698, 16
        %s700 = scalar_lea.vmem [#allocation2], %s699
        %p701 = scmp.lt.s32.totalorder %s20, 1
        %s702 = scalar_select %p701, %s20, 1
        %s703 = smul.addr %s702, 2
        %s704 = scalar_lea.vmem %s5, %s703
        // Predicated region
        $region37: #{_device_stage1.1} parent=35 // pred_check
          %p705 = pneg %p132
        $region38: #{_device_stage1.1} parent=35 // pred_check_branch
          %707 = sbr.rel (%p705) target = $region40
        $region39: #{_device_stage1.1} parent=35 // pred_region
          %s709 = ssub.s32 256, 256
          %710 = vsyncadd %s697, %s709
          %s711 = smul.addr %s20, 2
          %s712 = smul.addr %s711, 128
          %s713 = scalar_lea.hbm %s4, %s712
          %s714 = sshll.u32 %s700, 4
          %s715 = int_to_ptr.vmem [resolvable:$true] %s714
          %720 = dma.vmem_to_hbm [thread:$0]  %s715, 256, %s713, %s697, 128, 128, 8
        $region40: #{_device_stage1.1} parent=35 // pred_fallthru
          _
        // Predicated region
        $region41: #{_device_stage1.1} parent=35 // pred_check
          %p721 = pneg %p158
        $region42: #{_device_stage1.1} parent=35 // pred_check_branch
          %723 = sbr.rel (%p721) target = $region44
        $region43: #{_device_stage1.1} parent=35 // pred_region
          _
        $region44: #{_device_stage1.1} parent=35 // pred_fallthru
          _
      $region36: #{_device_stage1.1} parent=5 // pred_fallthru
        _
      %p724 = scmp.le.s32.totalorder 2, %s15
      // Predicated region
      $region45: #{_device_stage1.1} parent=5 // pred_check
        %p725 = pneg %p724
      $region46: #{_device_stage1.1} parent=5 // pred_check_branch
        %727 = sbr.rel (%p725) target = $region48
      $region47: #{_device_stage1.1} parent=5 // pred_region
        %s728 = ssub.s32 %s15, 2
        // Predicated region
        $region49: #{_device_stage1.1} parent=47 // pred_check
          %p729 = pneg %p138
        $region50: #{_device_stage1.1} parent=47 // pred_check_branch
          %731 = sbr.rel (%p729) target = $region52
        $region51: #{_device_stage1.1} parent=47 // pred_region
          %s732 = sand.u32 %s123, 1
          %s733 = scalar_lea.sflag [#allocation3], %s732
          %s734 = sand.u32 %s123, 1
          %s735 = smul.addr %s734, 16
          %s736 = scalar_lea.vmem [#allocation2], %s735
          %737 = dma.done %s733, 256
        $region52: #{_device_stage1.1} parent=47 // pred_fallthru
          _
        // Predicated region
        $region53: #{_device_stage1.1} parent=47 // pred_check
          %p738 = pneg %p164
        $region54: #{_device_stage1.1} parent=47 // pred_check_branch
          %740 = sbr.rel (%p738) target = $region56
        $region55: #{_device_stage1.1} parent=47 // pred_region
          %p741 = scmp.lt.s32.totalorder %s21, 1
          %s742 = scalar_select %p741, %s21, 1
          %s743 = smul.addr %s742, 2
          %s744 = scalar_lea.vmem %s5, %s743
        $region56: #{_device_stage1.1} parent=47 // pred_fallthru
          _
      $region48: #{_device_stage1.1} parent=5 // pred_fallthru
        _
    $region6: #{_device_stage1.1} parent=1 // loop_footer
      %s19 = sadd.s32 1, %s15
    $region7: #{_device_stage1.1} parent=1 // loop_footer_branch
      %14 = sbr.rel target = $region3
    $region8: #{_device_stage1.1} parent=1 // loop_exit
      _
    %745 = vsyncpa [#allocation3], 1
    %s746 = scalar_lea.sflag [#allocation3], 1
    %747 = vsyncpa %s746, 1

</llo_original>
